<compile_context>
chip_gen: v7x
topology: tpu7x:2x2x1
jax: 0.10.0
libtpu: 0.0.40
codegen_flags: <defaults>
</compile_context>

<pallas_src>
import jax
import jax.numpy as jnp
from jax.experimental import pallas as pl
from jax.experimental.pallas import tpu as pltpu


def masked_scaled_average_kernel(x_ref, m_ref, s_ref, o_ref, acc_ref):
    # x_ref:   (TB, TN, D)   input tile (native dtype)
    # m_ref:   (TB, TN)      mask tile (native dtype, lane-dense)
    # s_ref:   (TB, 1)       f32 precomputed 1/sqrt(sum(m)) per batch row
    # o_ref:   (TB, D)       output tile (written once, at the last N step)
    # acc_ref: (TB, SUB, D)  f32 widened accumulator (resident across the N grid axis)
    k = pl.program_id(1)

    @pl.when(k == 0)
    def _init():
        acc_ref[...] = jnp.zeros_like(acc_ref)

    tb, tn, d = x_ref.shape
    sub = acc_ref.shape[1]

    x = x_ref[...].astype(jnp.float32)      # upcast at load: exact f32 VPU math
    mk = m_ref[...].astype(jnp.float32)     # (TB, TN)
    # VPU broadcast-multiply; the mask's lane->sublane relayout + lane broadcast is
    # ~TB*TN/1024 vregs of XLU work (free filler next to DMA/VPU).
    prod = x * mk[:, :, None]               # (TB, TN, D)

    if sub == 1:
        # Unaligned-N single-block fallback: direct cross-sublane reduce.
        acc_ref[...] += prod.sum(axis=1, keepdims=True)
    else:
        # Partial reduce over groups of `sub` consecutive n rows: the sublane-axis
        # split is 8-aligned, so this lowers to pure vreg adds on the VPU; the
        # cross-sublane reduce is deferred to finalize.
        acc_ref[...] += prod.reshape(tb, tn // sub, sub, d).sum(axis=1)

    @pl.when(k == pl.num_programs(1) - 1)
    def _finalize():
        red = acc_ref[...].sum(axis=1)                       # (TB, D): one SUB-way XLU reduce
        o_ref[...] = (red * s_ref[...]).astype(o_ref.dtype)  # broadcast scale + store


def _select_block_n(N, max_tn):
    """Return (block_n, padded_n): either block_n == N (single N step), or a multiple
    of 128 that divides padded_n (= N rounded up to a multiple of 128)."""
    if N <= max_tn:
        return N, N
    n128 = -(-N // 128)                      # ceil(N / 128)
    max_chunks = max(1, max_tn // 128)
    chunks = 1
    for c in range(min(max_chunks, n128), 0, -1):
        if n128 % c == 0:
            chunks = c
            break
    return chunks * 128, n128 * 128


def masked_scaled_average(X, m):
    """X: (B, N, D), m: (B, N).  Returns (B, D) = (X*m[...,None]).sum(1)/sqrt(m.sum(1))."""
    B, N, D = X.shape
    assert m.shape == (B, N), f"mask shape {m.shape} != {(B, N)}"
    out_dtype = X.dtype

    # Hoisted out of the kernel: per-row scale 1/sqrt(sum(m)) as a tiny (B, 1) f32 input.
    scale = 1.0 / jnp.sqrt(jnp.sum(m.astype(jnp.float32), axis=1, keepdims=True))

    # --- tile selection ---------------------------------------------------------
    # block_b: multiple of 8 (or full B) so every 2-D block keeps (8, 128) sublane
    # alignment; B=16 still yields 2 balanced "parallel" programs for v7x's 2 TCs.
    block_b = 8 if (B % 8 == 0) else B
    # TODO(synk): for B not divisible by 8 with very large B*D, tile D as a second
    # "parallel" grid axis instead of taking the full batch per block.
    # TODO(synk): for D < 128, pack g=128//D consecutive n rows into the lane axis
    # (wrapper reshape + in-kernel mask expansion) for a fully lane-dense datapath.

    # block_n: sized so the X block is ~8 MiB-class (<= 2M elements).  Double-buffered
    # inputs + f32 temporaries then stay well under the 48 MiB scoped-VMEM request.
    max_elems = 2 * 1024 * 1024
    max_tn = max(128, max_elems // max(1, block_b * D))
    block_n, n_pad = _select_block_n(N, max_tn)

    if n_pad != N:
        # Zero-pad the reduction axis (pad rows contribute 0; `scale` already computed
        # from the unpadded mask, so semantics are unchanged).
        # TODO(synk): mask the tail block in-kernel instead to avoid this HBM copy.
        X = jnp.pad(X, ((0, 0), (0, n_pad - N), (0, 0)))
        m = jnp.pad(m, ((0, 0), (0, n_pad - N)))

    sub = 8 if (block_n % 8 == 0) else 1
    grid = (B // block_b, n_pad // block_n)

    itemsize = jnp.dtype(X.dtype).itemsize
    cost = pl.CostEstimate(
        flops=2 * B * n_pad * D,
        transcendentals=0,
        bytes_accessed=int(B * n_pad * D * itemsize
                           + B * n_pad * jnp.dtype(m.dtype).itemsize
                           + B * 4
                           + B * D * jnp.dtype(out_dtype).itemsize),
    )

    return pl.pallas_call(
        masked_scaled_average_kernel,
        out_shape=jax.ShapeDtypeStruct((B, D), out_dtype),
        grid_spec=pltpu.PrefetchScalarGridSpec(
            num_scalar_prefetch=0,
            grid=grid,
            in_specs=[
                pl.BlockSpec((block_b, block_n, D), lambda i, k: (i, k, 0)),
                pl.BlockSpec((block_b, block_n), lambda i, k: (i, k)),
                pl.BlockSpec((block_b, 1), lambda i, k: (i, 0)),
            ],
            # Output block ignores the N index -> stays resident across the reduction.
            out_specs=pl.BlockSpec((block_b, D), lambda i, k: (i, 0)),
            scratch_shapes=[pltpu.VMEM((block_b, sub, D), jnp.float32)],
        ),
        compiler_params=pltpu.CompilerParams(
            dimension_semantics=("parallel", "arbitrary"),
            vmem_limit_bytes=48 * 1024 * 1024,
        ),
        cost_estimate=cost,
    )(X, m, scale)


def masked_scaled_average_ref(X, m):
    # Pure-JAX reference mirroring the PyTorch module.
    Xm = X * m[:, :, None]
    return Xm.sum(axis=1) / jnp.sqrt(m.sum(axis=1))[:, None]


if __name__ == "__main__":
    root = jax.random.PRNGKey(0)

    def run_case(B, N, D, dtype=jnp.float32, tol=1e-4):
        kx, km = jax.random.split(jax.random.fold_in(root, B * 100003 + N * 131 + D))
        X = jax.random.normal(kx, (B, N, D), dtype=dtype)
        # Binary mask with at least one active element per row (an all-zero row would
        # be inf/NaN in both the kernel and the PyTorch reference).
        m = (jax.random.uniform(km, (B, N)) > 0.4).astype(dtype)
        m = m.at[:, 0].set(1.0)

        out = jax.block_until_ready(masked_scaled_average(X, m))
        ref = masked_scaled_average_ref(X, m)
        assert out.shape == (B, D)
        assert jnp.allclose(out, ref, atol=tol, rtol=tol), \
            f"mismatch vs reference at B={B} N={N} D={D}"

    # Small shape consistent with the module spec (single-block path).
    run_case(B=2, N=8, D=32)
    # Larger shape exercising the tiled (parallel B, arbitrary N) grid + accumulator.
    run_case(B=16, N=2048, D=256, tol=2e-3)

    print("KERNEL_OK")
</pallas_src>

<mosaic_0001>
module attributes {stable_mosaic.version = 11 : i64} {
  func.func @masked_scaled_average_kernel(%arg0: i32, %arg1: i32, %arg2: memref<2x8x32xf32, #tpu.memory_space<vmem>>, %arg3: memref<2x8xf32, #tpu.memory_space<vmem>>, %arg4: memref<2x1xf32, #tpu.memory_space<vmem>>, %arg5: memref<2x32xf32, #tpu.memory_space<vmem>>, %arg6: memref<2x8x32xf32, #tpu.memory_space<vmem>>) attributes {dimension_semantics = [#tpu.dimension_semantics<parallel>, #tpu.dimension_semantics<arbitrary>], iteration_bounds = array<i64: 1, 1>, scalar_prefetch = 0 : i64, scratch_operands = 1 : i64, tpu.core_type = #tpu.core_type<tc>, window_params = [{transform_indices = @transform_0, window_bounds = array<i64: 2, 8, 32>}, {transform_indices = @transform_1, window_bounds = array<i64: 2, 8>}, {transform_indices = @transform_2, window_bounds = array<i64: 2, 1>}, {transform_indices = @transform_3, window_bounds = array<i64: 2, 32>}]} {
    %c0_i32 = arith.constant 0 : i32
    %0 = arith.cmpi eq, %arg1, %c0_i32 : i32
    %1 = arith.extui %0 : i1 to i32
    %c0_i32_0 = arith.constant 0 : i32
    %2 = arith.cmpi ne, %1, %c0_i32_0 : i32
    scf.if %2 {
      %cst_13 = arith.constant 0.000000e+00 : f32
      %16 = vector.broadcast %cst_13 : f32 to vector<2x8x32xf32>
      %c0_14 = arith.constant 0 : index
      %c0_15 = arith.constant 0 : index
      %c0_16 = arith.constant 0 : index
      %17 = vector.load %arg6[%c0_14, %c0_15, %c0_16] : memref<2x8x32xf32, #tpu.memory_space<vmem>>, vector<2x8x32xf32>
      tpu.vector_store %arg6[%c0_14, %c0_15, %c0_16], %16 {strides = array<i32>} : memref<2x8x32xf32, #tpu.memory_space<vmem>>, vector<2x8x32xf32>,
    } else {
    }
    %c0 = arith.constant 0 : index
    %c0_1 = arith.constant 0 : index
    %c0_2 = arith.constant 0 : index
    %3 = vector.load %arg2[%c0, %c0_1, %c0_2] : memref<2x8x32xf32, #tpu.memory_space<vmem>>, vector<2x8x32xf32>
    %c0_3 = arith.constant 0 : index
    %c0_4 = arith.constant 0 : index
    %4 = vector.load %arg3[%c0_3, %c0_4] : memref<2x8xf32, #tpu.memory_space<vmem>>, vector<2x8xf32>
    %5 = vector.shape_cast %4 : vector<2x8xf32> to vector<2x8x1xf32>
    %6 = vector.broadcast %5 : vector<2x8x1xf32> to vector<2x8x32xf32>
    %7 = arith.mulf %3, %6 : vector<2x8x32xf32>
    %c0_5 = arith.constant 0 : index
    %c0_6 = arith.constant 0 : index
    %c0_7 = arith.constant 0 : index
    %8 = vector.load %arg6[%c0_5, %c0_6, %c0_7] : memref<2x8x32xf32, #tpu.memory_space<vmem>>, vector<2x8x32xf32>
    %9 = vector.shape_cast %7 : vector<2x8x32xf32> to vector<2x1x8x32xf32>
    %cst = arith.constant dense<0.000000e+00> : vector<2x8x32xf32>
    %10 = vector.multi_reduction <add>, %9, %cst [1] : vector<2x1x8x32xf32> to vector<2x8x32xf32>
    %11 = arith.addf %8, %10 : vector<2x8x32xf32>
    %c0_8 = arith.constant 0 : index
    %c0_9 = arith.constant 0 : index
    %c0_10 = arith.constant 0 : index
    %12 = vector.load %arg6[%c0_8, %c0_9, %c0_10] : memref<2x8x32xf32, #tpu.memory_space<vmem>>, vector<2x8x32xf32>
    tpu.vector_store %arg6[%c0_8, %c0_9, %c0_10], %11 {strides = array<i32>} : memref<2x8x32xf32, #tpu.memory_space<vmem>>, vector<2x8x32xf32>,
    %c0_i32_11 = arith.constant 0 : i32
    %13 = arith.cmpi eq, %arg1, %c0_i32_11 : i32
    %14 = arith.extui %13 : i1 to i32
    %c0_i32_12 = arith.constant 0 : i32
    %15 = arith.cmpi ne, %14, %c0_i32_12 : i32
    scf.if %15 {
      %c0_13 = arith.constant 0 : index
      %c0_14 = arith.constant 0 : index
      %c0_15 = arith.constant 0 : index
      %16 = vector.load %arg6[%c0_13, %c0_14, %c0_15] : memref<2x8x32xf32, #tpu.memory_space<vmem>>, vector<2x8x32xf32>
      %cst_16 = arith.constant dense<0.000000e+00> : vector<2x32xf32>
      %17 = vector.multi_reduction <add>, %16, %cst_16 [1] : vector<2x8x32xf32> to vector<2x32xf32>
      %c0_17 = arith.constant 0 : index
      %c0_18 = arith.constant 0 : index
      %18 = vector.load %arg4[%c0_17, %c0_18] : memref<2x1xf32, #tpu.memory_space<vmem>>, vector<2x1xf32>
      %19 = vector.broadcast %18 : vector<2x1xf32> to vector<2x32xf32>
      %20 = arith.mulf %17, %19 : vector<2x32xf32>
      %c0_19 = arith.constant 0 : index
      %c0_20 = arith.constant 0 : index
      %21 = vector.load %arg5[%c0_19, %c0_20] : memref<2x32xf32, #tpu.memory_space<vmem>>, vector<2x32xf32>
      tpu.vector_store %arg5[%c0_19, %c0_20], %20 {strides = array<i32>} : memref<2x32xf32, #tpu.memory_space<vmem>>, vector<2x32xf32>,
    } else {
    }
    return
  }
  func.func @transform_0(%arg0: i32, %arg1: i32) -> (i32, i32, i32) {
    %c0_i32 = arith.constant 0 : i32
    %c0_i32_0 = arith.constant 0 : i32
    return %arg0, %arg1, %c0_i32 : i32, i32, i32
  }
  func.func @transform_1(%arg0: i32, %arg1: i32) -> (i32, i32) {
    %c0_i32 = arith.constant 0 : i32
    return %arg0, %arg1 : i32, i32
  }
  func.func @transform_2(%arg0: i32, %arg1: i32) -> (i32, i32) {
    %c0_i32 = arith.constant 0 : i32
    %c0_i32_0 = arith.constant 0 : i32
    return %arg0, %c0_i32 : i32, i32
  }
  func.func @transform_3(%arg0: i32, %arg1: i32) -> (i32, i32) {
    %c0_i32 = arith.constant 0 : i32
    %c0_i32_0 = arith.constant 0 : i32
    return %arg0, %c0_i32 : i32, i32
  }
}

</mosaic_0001>

<llo_original>
// kernel: tpu_custom_call.1
$region0: #{tpu_custom_call.1}
  #allocation0 [shape = 'u32[]', space=smem, size = 0x4, offset = 0x4, fixed_abs, tag = 'smem constant byte address 0x4 - core index']
  #allocation1 [shape = 'u32[144,128]{1,0:T(1,128)}', space=vmem, size = 0x12000, scoped, tag = 'internal scratch']
  #allocation2 [shape = 'f32[2,8,32]{2,1,0:T(8,128)}', space=vmem, size = 0x2000, scoped, tag = 'scratch operand']
  %s0 = inlined_call_operand.hbm [shape: f32[2,8,32], index: 0, kind: input, shape index: {}]
  %s1 = inlined_call_operand.vmem [shape: f32[2,8], index: 1, kind: input, shape index: {}]
  %s2 = inlined_call_operand.vmem [shape: f32[2,1], index: 2, kind: input, shape index: {}]
  %s3 = inlined_call_operand.hbm [shape: f32[2,32], index: 3, kind: output, shape index: {}]
  %s4 = sld [smem:[#allocation0]]
  $region34: #{tpu_custom_call.1} parent=0
    _
  %s6 = ssub.s32 1, %s4
  %s7 = scalar_select 0, %s6, %s4
  $region1: #{tpu_custom_call.1} parent=0
    #allocation3 [shape = 'u8[8192]{0}', space=vmem, size = 0x2000, scoped, tag = 'input window, operand 0, single buffered']
    #allocation4 [shape = 's32[1]{0}', space=sflag, size = 0x4, scoped, tag = 'scoped memory for tpu_custom_call.1']
    #allocation5 [shape = 's32[1]{0}', space=sflag, size = 0x4, scoped, tag = 'scoped memory for tpu_custom_call.1']
    #allocation6 [shape = 'u8[1024]{0}', space=vmem, size = 0x400, scoped, tag = 'output window, operand 0, single buffered']
    %8 = vsyncpa [#allocation4], 0
    %9 = vsyncpa [#allocation5], 0
    // Predicated region
    $region2: #{tpu_custom_call.1} parent=1 // pred_check
      _
    $region3: #{tpu_custom_call.1} parent=1 // pred_check_branch
      %11 = sbr.rel (0) target = $region5
    $region4: #{tpu_custom_call.1} parent=1 // pred_region
      %s13 = ssub.s32 256, 256
      %14 = vsyncadd [#allocation4], %s13
      %s15 = sshll.u32 [#allocation3], 4
      %s16 = int_to_ptr.vmem [resolvable:$true] %s15
      %21 = dma.hbm_to_vmem [thread:$0]  %s0, 256, %s16, [#allocation4], 128, 128, 8
    $region5: #{tpu_custom_call.1} parent=1 // pred_fallthru
      _
    // Predicated region
    $region6: #{tpu_custom_call.1} parent=1 // pred_check
      _
    $region7: #{tpu_custom_call.1} parent=1 // pred_check_branch
      %23 = sbr.rel (0) target = $region9
    $region8: #{tpu_custom_call.1} parent=1 // pred_region
      _
    $region9: #{tpu_custom_call.1} parent=1 // pred_fallthru
      _
    // Predicated region
    $region10: #{tpu_custom_call.1} parent=1 // pred_check
      _
    $region11: #{tpu_custom_call.1} parent=1 // pred_check_branch
      %25 = sbr.rel (0) target = $region13
    $region12: #{tpu_custom_call.1} parent=1 // pred_region
      _
    $region13: #{tpu_custom_call.1} parent=1 // pred_fallthru
      _
    // Predicated region
    $region14: #{tpu_custom_call.1} parent=1 // pred_check
      _
    $region15: #{tpu_custom_call.1} parent=1 // pred_check_branch
      %27 = sbr.rel (0) target = $region17
    $region16: #{tpu_custom_call.1} parent=1 // pred_region
      %28 = dma.done [#allocation4], 256
    $region17: #{tpu_custom_call.1} parent=1 // pred_fallthru
      _
    %p29 = scmp.eq.s32.totalorder 0, 0
    // Predicated region
    $region18: #{tpu_custom_call.1} parent=1 // pred_check
      %p30 = pneg %p29
    $region19: #{tpu_custom_call.1} parent=1 // pred_check_branch
      %32 = sbr.rel (%p30) target = $region21
    $region20: #{tpu_custom_call.1} parent=1 // pred_region
      %vm33 = vcmask 261120
      %34 = vst.msk [vmem:[#allocation2] sm:$0xff] %vm33, 0.0
      %35 = vst.msk [vmem:[#allocation2 + $0x8] sm:$0xff] %vm33, 0.0
    $region21: #{tpu_custom_call.1} parent=1 // pred_fallthru
      _
    %v36 = vld [vmem:[#allocation3] sm:$0xff]
    %v37 = vld [vmem:[#allocation3 + $0x8] sm:$0xff]
    %v38 = vld [vmem:[%s1] sm:$0x3]
    %v39 = vlaneseq
    %v40 = vshrl.u32 %v39, 7
    %v41 = vsub.s32 0, %v40
    %v42 = vrot.slane %v38, %v41
    %44 = vbcast.lane.b32.xlu0 %v42, 256
    %v45 = vpop.permute.xlu0 %44
    %v46 = vlaneseq
    %v47 = vshrl.u32 %v46, 7
    %v48 = vsub.s32 1, %v47
    %v49 = vrot.slane %v38, %v48
    %51 = vbcast.lane.b32.xlu0 %v49, 256
    %v52 = vpop.permute.xlu0 %51
    %v53 = vmul.f32 %v36, %v45
    %v54 = vmul.f32 %v37, %v52
    %v55 = vld [vmem:[#allocation2] sm:$0xff]
    %v56 = vld [vmem:[#allocation2 + $0x8] sm:$0xff]
    %v57 = vadd.f32 %v53, 0.0
    %v58 = vadd.f32 %v54, 0.0
    %v59 = vadd.f32 %v55, %v57
    %v60 = vadd.f32 %v56, %v58
    %vm61 = vcmask 261120
    %62 = vst.msk [vmem:[#allocation2] sm:$0xff] %vm61, %v59
    %63 = vst.msk [vmem:[#allocation2 + $0x8] sm:$0xff] %vm61, %v60
    // Predicated region
    $region22: #{tpu_custom_call.1} parent=1 // pred_check
      %p64 = pneg %p29
    $region23: #{tpu_custom_call.1} parent=1 // pred_check_branch
      %66 = sbr.rel (%p64) target = $region25
    $region24: #{tpu_custom_call.1} parent=1 // pred_region
      %v67 = vld [vmem:[#allocation2] sm:$0xff]
      %v68 = vld [vmem:[#allocation2 + $0x8] sm:$0xff]
      %v69 = vsel %vm61, %v67, 0.0
      %v70 = vrot.slane %v69, 4
      %v71 = vadd.f32 %v69, %v70
      %v72 = vrot.slane %v71, 2
      %v73 = vadd.f32 %v71, %v72
      %v74 = vrot.slane %v73, 1
      %v75 = vadd.f32 %v73, %v74
      %v76 = vsel %vm61, %v68, 0.0
      %v77 = vrot.slane %v76, 4
      %v78 = vadd.f32 %v76, %v77
      %v79 = vrot.slane %v78, 2
      %v80 = vadd.f32 %v78, %v79
      %v81 = vrot.slane %v80, 1
      %v82 = vadd.f32 %v80, %v81
      %v83 = vld [vmem:[%s2] sm:$0x3]
      %85 = vset.pattern.permute.xlu0 0
      %86 = vperm.xlu0 %85, %v83
      %v87 = vpop.permute.xlu0 %86
      %v88 = vrot.slane %v87, 1
      %v91 = vmul.f32 %v75, %v87
      %v92 = vmul.f32 %v82, %v88
      %v95 = vrot.slane %v92, 7
      %vm96 = vcmask 1041409
      %v97 = vsel %vm96, %v95, %v91
      %vm99 = vcmask 254976
      %100 = vst.msk [vmem:[#allocation6] sm:$0x3] %vm99, %v97
    $region25: #{tpu_custom_call.1} parent=1 // pred_fallthru
      _
    // Predicated region
    $region26: #{tpu_custom_call.1} parent=1 // pred_check
      _
    $region27: #{tpu_custom_call.1} parent=1 // pred_check_branch
      %102 = sbr.rel (0) target = $region29
    $region28: #{tpu_custom_call.1} parent=1 // pred_region
      %s104 = ssub.s32 32, 32
      %105 = vsyncadd [#allocation5], %s104
      %s107 = sshll.u32 [#allocation6], 4
      %s108 = int_to_ptr.vmem [resolvable:$true] %s107
      %110 = dma.vmem_to_hbm [thread:$0]  %s108, 32, %s3, [#allocation5]
    $region29: #{tpu_custom_call.1} parent=1 // pred_fallthru
      _
    // Predicated region
    $region30: #{tpu_custom_call.1} parent=1 // pred_check
      _
    $region31: #{tpu_custom_call.1} parent=1 // pred_check_branch
      %112 = sbr.rel (0) target = $region33
    $region32: #{tpu_custom_call.1} parent=1 // pred_region
      %113 = dma.done [#allocation5], 32
    $region33: #{tpu_custom_call.1} parent=1 // pred_fallthru
      _
    %114 = vsyncpa [#allocation4], 1
    %115 = vsyncpa [#allocation5], 1

</llo_original>
